<compile_context>
chip_gen: v6e
topology: v6e:2x2x1
jax: 0.10.0
libtpu: 0.0.40
codegen_flags: <defaults>
</compile_context>

<pallas_src>
import functools

import jax
import jax.numpy as jnp
from jax.experimental import pallas as pl
from jax.experimental.pallas import tpu as pltpu

LANES = 128  # vreg lane width: last dim of every tile


def _step_kernel(fv_ref, x_ref, o_ref, *, start, stop):
    """One (row_tile, 128) tile: monotone threshold chain -> table value (VPU only)."""
    num = stop - start + 1

    x = x_ref[...]
    xdt = x.dtype

    # Hoist the `num` scalar table reads (SMEM) out of the per-vreg strip loop.
    fv = [fv_ref[k] for k in range(num)]  # f32 scalars

    # Threshold chain, bit-exact with clamp + floor + lookup:
    #   x <  start+1            -> fv[0]      (covers the low clamp, x < start)
    #   start+k <= x < start+k+1 -> fv[k]
    #   x >= stop               -> fv[num-1]  (covers the high clamp)
    out = jnp.broadcast_to(fv[0], x.shape)
    for k in range(1, num):
        thr = jnp.asarray(start + k, dtype=xdt)   # small ints: exact in f32/bf16
        out = jnp.where(x >= thr, fv[k], out)

    o_ref[...] = out.astype(o_ref.dtype)          # single cast at the store


def step_forward(x, function_values, *, start=-8, stop=8, max_row_tile=2048):
    """StepFunction forward over an arbitrarily-shaped x via a lane-dense Pallas kernel."""
    orig_shape = x.shape
    out_dtype = function_values.dtype
    n = x.size

    # Lane-dense (rows, 128) layout with no whole-tensor copies in the common case:
    # only a ragged tail (n % 128 != 0) needs a pad (and a slice on the way out).
    flat = x.reshape(-1)                          # keep x's native dtype (no upcast)
    ragged = (n % LANES) != 0
    if ragged:
        padded_n = pl.cdiv(n, LANES) * LANES
        flat = jnp.pad(flat, (0, padded_n - n))
    rows = flat.shape[0] // LANES
    x2d = flat.reshape(rows, LANES)

    # Tiny lookup table lives whole in SMEM (f32 for clean scalar loads).
    fv_smem = function_values.astype(jnp.float32)

    # Sublane alignment for the row tile: 16 if a 16-bit dtype is involved, else 8.
    min_bytes = min(jnp.dtype(x.dtype).itemsize, jnp.dtype(out_dtype).itemsize)
    sub_align = 8 if min_bytes >= 4 else 16

    # Balanced tiles; aim for >= 2 grid steps so both v7x TensorCores get work.
    # Uneven rows (rows % row_tile != 0, or rows < row_tile) rely on Pallas
    # edge-block masking — no extra padding of the whole array.
    target_steps = max(2, pl.cdiv(rows, int(max_row_tile)))
    row_tile = max(sub_align,
                   ((pl.cdiv(rows, target_steps) + sub_align - 1) // sub_align) * sub_align)
    grid = (pl.cdiv(rows, row_tile),)

    kernel = functools.partial(_step_kernel, start=int(start), stop=int(stop))

    out2d = pl.pallas_call(
        kernel,
        out_shape=jax.ShapeDtypeStruct((rows, LANES), out_dtype),
        grid=grid,
        in_specs=[
            pl.BlockSpec(memory_space=pltpu.MemorySpace.SMEM),   # whole table, copied once
            pl.BlockSpec((row_tile, LANES), lambda i: (i, 0)),   # x tile
        ],
        out_specs=pl.BlockSpec((row_tile, LANES), lambda i: (i, 0)),
        compiler_params=pltpu.CompilerParams(
            dimension_semantics=("parallel",),
        ),
    )(fv_smem, x2d)

    if ragged:
        return out2d.reshape(-1)[:n].reshape(orig_shape)
    return out2d.reshape(orig_shape)


def step_reference(x, function_values, start=-8, stop=8):
    """Pure-JAX reference of the same forward for a sanity check."""
    xc = jnp.clip(x, start, stop)
    idx = (xc - start).astype(jnp.int32)
    return function_values[idx]


if __name__ == "__main__":
    key = jax.random.PRNGKey(0)
    kx, kf = jax.random.split(key)

    START, STOP = -8, 8
    num = STOP - START + 1

    # Small example: elementwise op, shape (2, 4, 16, 16); values span past [-8, 8]
    # so both clamp branches and the full table range get exercised.
    x = 6.0 * jax.random.normal(kx, (2, 4, 16, 16), jnp.float32)
    function_values = jax.random.normal(kf, (num,), jnp.float32)

    run = jax.jit(functools.partial(step_forward, start=START, stop=STOP))
    out = jax.block_until_ready(run(x, function_values))

    ref = step_reference(x, function_values, START, STOP)
    assert out.shape == x.shape and out.dtype == ref.dtype
    assert jnp.allclose(out, ref), (out, ref)

    print("KERNEL_OK")
</pallas_src>

<mosaic_0001>
module attributes {stable_mosaic.version = 11 : i64} {
  func.func @_step_kernel(%arg0: i32, %arg1: memref<17xf32, #tpu.memory_space<smem>>, %arg2: memref<8x128xf32, #tpu.memory_space<vmem>>, %arg3: memref<8x128xf32, #tpu.memory_space<vmem>>) attributes {dimension_semantics = [#tpu.dimension_semantics<parallel>], iteration_bounds = array<i64: 2>, scalar_prefetch = 0 : i64, scratch_operands = 0 : i64, tpu.core_type = #tpu.core_type<tc>, window_params = [{transform_indices = @transform_0, window_bounds = array<i64: 17>}, {transform_indices = @transform_1, window_bounds = array<i64: 8, 128>}, {transform_indices = @transform_2, window_bounds = array<i64: 8, 128>}]} {
    %c0 = arith.constant 0 : index
    %c0_0 = arith.constant 0 : index
    %0 = vector.load %arg2[%c0, %c0_0] : memref<8x128xf32, #tpu.memory_space<vmem>>, vector<8x128xf32>
    %c0_1 = arith.constant 0 : index
    %1 = memref.load %arg1[%c0_1] : memref<17xf32, #tpu.memory_space<smem>>
    %c1 = arith.constant 1 : index
    %2 = memref.load %arg1[%c1] : memref<17xf32, #tpu.memory_space<smem>>
    %c2 = arith.constant 2 : index
    %3 = memref.load %arg1[%c2] : memref<17xf32, #tpu.memory_space<smem>>
    %c3 = arith.constant 3 : index
    %4 = memref.load %arg1[%c3] : memref<17xf32, #tpu.memory_space<smem>>
    %c4 = arith.constant 4 : index
    %5 = memref.load %arg1[%c4] : memref<17xf32, #tpu.memory_space<smem>>
    %c5 = arith.constant 5 : index
    %6 = memref.load %arg1[%c5] : memref<17xf32, #tpu.memory_space<smem>>
    %c6 = arith.constant 6 : index
    %7 = memref.load %arg1[%c6] : memref<17xf32, #tpu.memory_space<smem>>
    %c7 = arith.constant 7 : index
    %8 = memref.load %arg1[%c7] : memref<17xf32, #tpu.memory_space<smem>>
    %c8 = arith.constant 8 : index
    %9 = memref.load %arg1[%c8] : memref<17xf32, #tpu.memory_space<smem>>
    %c9 = arith.constant 9 : index
    %10 = memref.load %arg1[%c9] : memref<17xf32, #tpu.memory_space<smem>>
    %c10 = arith.constant 10 : index
    %11 = memref.load %arg1[%c10] : memref<17xf32, #tpu.memory_space<smem>>
    %c11 = arith.constant 11 : index
    %12 = memref.load %arg1[%c11] : memref<17xf32, #tpu.memory_space<smem>>
    %c12 = arith.constant 12 : index
    %13 = memref.load %arg1[%c12] : memref<17xf32, #tpu.memory_space<smem>>
    %c13 = arith.constant 13 : index
    %14 = memref.load %arg1[%c13] : memref<17xf32, #tpu.memory_space<smem>>
    %c14 = arith.constant 14 : index
    %15 = memref.load %arg1[%c14] : memref<17xf32, #tpu.memory_space<smem>>
    %c15 = arith.constant 15 : index
    %16 = memref.load %arg1[%c15] : memref<17xf32, #tpu.memory_space<smem>>
    %c16 = arith.constant 16 : index
    %17 = memref.load %arg1[%c16] : memref<17xf32, #tpu.memory_space<smem>>
    %18 = vector.broadcast %1 : f32 to vector<8x128xf32>
    %cst = arith.constant -7.000000e+00 : f32
    %19 = vector.broadcast %cst : f32 to vector<8x128xf32>
    %20 = arith.cmpf oge, %0, %19 : vector<8x128xf32>
    %21 = vector.broadcast %2 : f32 to vector<8x128xf32>
    %22 = arith.select %20, %21, %18 : vector<8x128xi1>, vector<8x128xf32>
    %cst_2 = arith.constant -6.000000e+00 : f32
    %23 = vector.broadcast %cst_2 : f32 to vector<8x128xf32>
    %24 = arith.cmpf oge, %0, %23 : vector<8x128xf32>
    %25 = vector.broadcast %3 : f32 to vector<8x128xf32>
    %26 = arith.select %24, %25, %22 : vector<8x128xi1>, vector<8x128xf32>
    %cst_3 = arith.constant -5.000000e+00 : f32
    %27 = vector.broadcast %cst_3 : f32 to vector<8x128xf32>
    %28 = arith.cmpf oge, %0, %27 : vector<8x128xf32>
    %29 = vector.broadcast %4 : f32 to vector<8x128xf32>
    %30 = arith.select %28, %29, %26 : vector<8x128xi1>, vector<8x128xf32>
    %cst_4 = arith.constant -4.000000e+00 : f32
    %31 = vector.broadcast %cst_4 : f32 to vector<8x128xf32>
    %32 = arith.cmpf oge, %0, %31 : vector<8x128xf32>
    %33 = vector.broadcast %5 : f32 to vector<8x128xf32>
    %34 = arith.select %32, %33, %30 : vector<8x128xi1>, vector<8x128xf32>
    %cst_5 = arith.constant -3.000000e+00 : f32
    %35 = vector.broadcast %cst_5 : f32 to vector<8x128xf32>
    %36 = arith.cmpf oge, %0, %35 : vector<8x128xf32>
    %37 = vector.broadcast %6 : f32 to vector<8x128xf32>
    %38 = arith.select %36, %37, %34 : vector<8x128xi1>, vector<8x128xf32>
    %cst_6 = arith.constant -2.000000e+00 : f32
    %39 = vector.broadcast %cst_6 : f32 to vector<8x128xf32>
    %40 = arith.cmpf oge, %0, %39 : vector<8x128xf32>
    %41 = vector.broadcast %7 : f32 to vector<8x128xf32>
    %42 = arith.select %40, %41, %38 : vector<8x128xi1>, vector<8x128xf32>
    %cst_7 = arith.constant -1.000000e+00 : f32
    %43 = vector.broadcast %cst_7 : f32 to vector<8x128xf32>
    %44 = arith.cmpf oge, %0, %43 : vector<8x128xf32>
    %45 = vector.broadcast %8 : f32 to vector<8x128xf32>
    %46 = arith.select %44, %45, %42 : vector<8x128xi1>, vector<8x128xf32>
    %cst_8 = arith.constant 0.000000e+00 : f32
    %47 = vector.broadcast %cst_8 : f32 to vector<8x128xf32>
    %48 = arith.cmpf oge, %0, %47 : vector<8x128xf32>
    %49 = vector.broadcast %9 : f32 to vector<8x128xf32>
    %50 = arith.select %48, %49, %46 : vector<8x128xi1>, vector<8x128xf32>
    %cst_9 = arith.constant 1.000000e+00 : f32
    %51 = vector.broadcast %cst_9 : f32 to vector<8x128xf32>
    %52 = arith.cmpf oge, %0, %51 : vector<8x128xf32>
    %53 = vector.broadcast %10 : f32 to vector<8x128xf32>
    %54 = arith.select %52, %53, %50 : vector<8x128xi1>, vector<8x128xf32>
    %cst_10 = arith.constant 2.000000e+00 : f32
    %55 = vector.broadcast %cst_10 : f32 to vector<8x128xf32>
    %56 = arith.cmpf oge, %0, %55 : vector<8x128xf32>
    %57 = vector.broadcast %11 : f32 to vector<8x128xf32>
    %58 = arith.select %56, %57, %54 : vector<8x128xi1>, vector<8x128xf32>
    %cst_11 = arith.constant 3.000000e+00 : f32
    %59 = vector.broadcast %cst_11 : f32 to vector<8x128xf32>
    %60 = arith.cmpf oge, %0, %59 : vector<8x128xf32>
    %61 = vector.broadcast %12 : f32 to vector<8x128xf32>
    %62 = arith.select %60, %61, %58 : vector<8x128xi1>, vector<8x128xf32>
    %cst_12 = arith.constant 4.000000e+00 : f32
    %63 = vector.broadcast %cst_12 : f32 to vector<8x128xf32>
    %64 = arith.cmpf oge, %0, %63 : vector<8x128xf32>
    %65 = vector.broadcast %13 : f32 to vector<8x128xf32>
    %66 = arith.select %64, %65, %62 : vector<8x128xi1>, vector<8x128xf32>
    %cst_13 = arith.constant 5.000000e+00 : f32
    %67 = vector.broadcast %cst_13 : f32 to vector<8x128xf32>
    %68 = arith.cmpf oge, %0, %67 : vector<8x128xf32>
    %69 = vector.broadcast %14 : f32 to vector<8x128xf32>
    %70 = arith.select %68, %69, %66 : vector<8x128xi1>, vector<8x128xf32>
    %cst_14 = arith.constant 6.000000e+00 : f32
    %71 = vector.broadcast %cst_14 : f32 to vector<8x128xf32>
    %72 = arith.cmpf oge, %0, %71 : vector<8x128xf32>
    %73 = vector.broadcast %15 : f32 to vector<8x128xf32>
    %74 = arith.select %72, %73, %70 : vector<8x128xi1>, vector<8x128xf32>
    %cst_15 = arith.constant 7.000000e+00 : f32
    %75 = vector.broadcast %cst_15 : f32 to vector<8x128xf32>
    %76 = arith.cmpf oge, %0, %75 : vector<8x128xf32>
    %77 = vector.broadcast %16 : f32 to vector<8x128xf32>
    %78 = arith.select %76, %77, %74 : vector<8x128xi1>, vector<8x128xf32>
    %cst_16 = arith.constant 8.000000e+00 : f32
    %79 = vector.broadcast %cst_16 : f32 to vector<8x128xf32>
    %80 = arith.cmpf oge, %0, %79 : vector<8x128xf32>
    %81 = vector.broadcast %17 : f32 to vector<8x128xf32>
    %82 = arith.select %80, %81, %78 : vector<8x128xi1>, vector<8x128xf32>
    %c0_17 = arith.constant 0 : index
    %c0_18 = arith.constant 0 : index
    %83 = vector.load %arg3[%c0_17, %c0_18] : memref<8x128xf32, #tpu.memory_space<vmem>>, vector<8x128xf32>
    tpu.vector_store %arg3[%c0_17, %c0_18], %82 {strides = array<i32>} : memref<8x128xf32, #tpu.memory_space<vmem>>, vector<8x128xf32>,
    return
  }
  func.func @transform_0(%arg0: i32) -> i32 {
    %c0_i32 = arith.constant 0 : i32
    %c0_i32_0 = arith.constant 0 : i32
    return %c0_i32 : i32
  }
  func.func @transform_1(%arg0: i32) -> (i32, i32) {
    %c0_i32 = arith.constant 0 : i32
    %c0_i32_0 = arith.constant 0 : i32
    return %arg0, %c0_i32 : i32, i32
  }
  func.func @transform_2(%arg0: i32) -> (i32, i32) {
    %c0_i32 = arith.constant 0 : i32
    %c0_i32_0 = arith.constant 0 : i32
    return %arg0, %c0_i32 : i32, i32
  }
}

</mosaic_0001>

<llo_original>
// kernel: step_forward.1
$region0: #{step_forward.1}
  #allocation0 [shape = 'u32[]', space=smem, size = 0x4, offset = 0x4, fixed_abs, tag = 'smem constant byte address 0x4 - core index']
  #allocation1 [shape = 'u32[144,128]{1,0:T(1,128)}', space=vmem, size = 0x12000, scoped, tag = 'internal scratch']
  %s0 = inlined_call_operand.vmem [shape: f32[17], index: 0, kind: input, shape index: {}]
  %s1 = inlined_call_operand.vmem [shape: f32[16,128], index: 1, kind: input, shape index: {}]
  %s2 = inlined_call_operand.vmem [shape: f32[16,128], index: 2, kind: output, shape index: {}]
  %s3 = sld [smem:[#allocation0]]
  $region45: #{step_forward.1} parent=0
    _
  %s5 = ssub.s32 1, %s3
  %s6 = scalar_select 0, %s5, %s3
  $region1: #{step_forward.1} parent=0
    #allocation2 [shape = 'u8[512]{0}', space=smem, size = 0x200, scoped, tag = 'input window, operand 0, single buffered']
    #allocation3 [shape = 's32[2]{0}', space=sflag, size = 0x8, scoped, tag = 'scoped memory for step_forward.1']
    %7 = vsyncpa [#allocation3], 0
    loop: start=0, step=1, limit=4
    $region2: #{step_forward.1} parent=1 // loop_pre_header
      _
    $region3: #{step_forward.1} parent=1 // loop_header
      %s9 = sphi 0, %s13
      %p10 = scmp.ge.s32.totalorder %s9, 4
      %s17 = sphi 0, %s17
      %s19 = sphi 0, %s17
      %s20 = sphi 0, %s19
      %s34 = sphi 0, %s20
      %s40 = sphi 0, %s42
      %s43 = sphi 0, %s40
      %s44 = sphi 0, %s43
      %s60 = sphi 0, %s44
      %s66 = sphi 0, %s68
      %s69 = sphi 0, %s66
      %s70 = sphi 0, %s69
      %s86 = sphi 0, %s70
    $region4: #{step_forward.1} parent=1 // loop_header_branch
      %12 = sbr.rel (%p10) target = $region8
    $region5: #{step_forward.1} parent=1 // loop_body
      %s14 = ssub.s32 %s9, 1
      %s15 = ssub.s32 %s9, 2
      %s16 = sadd.s32 %s9, 1
      %s18 = sadd.s32 %s17, 1
      %p21 = scmp.eq.s32.totalorder %s9, 1
      %p22 = scmp.ne.s32.totalorder %s17, %s19
      %p23 = scmp.eq.s32.totalorder %s9, 0
      %p24 = por %p22, %p23
      %p25 = scmp.ne.s32.totalorder %s17, %s19
      %p26 = scmp.eq.s32.totalorder %s14, 1
      %p27 = por %p25, %p26
      %p28 = scmp.ne.s32.totalorder %s19, %s20
      %p29 = scmp.eq.s32.totalorder %s14, 0
      %p30 = por %p28, %p29
      %p31 = scmp.ne.s32.totalorder %s19, %s20
      %p32 = scmp.eq.s32.totalorder %s15, 1
      %p33 = por %p31, %p32
      %p35 = scmp.ne.s32.totalorder %s20, %s34
      %p36 = scmp.eq.s32.totalorder %s15, 0
      %p37 = por %p35, %p36
      %s38 = ssub.s32 %s9, %s16
      %p39 = scmp.eq.s32.totalorder %s38, 0
      %s41 = sadd.s32 %s40, 1
      %s42 = scalar_select %p39, %s40, %s41
      %p45 = pneg %p39
      %p46 = scmp.eq.s32.totalorder %s9, 1
      %p47 = por %p45, %p46
      %p48 = scmp.ne.s32.totalorder %s40, %s43
      %p49 = scmp.eq.s32.totalorder %s9, 0
      %p50 = por %p48, %p49
      %p51 = scmp.ne.s32.totalorder %s40, %s43
      %p52 = scmp.eq.s32.totalorder %s14, 1
      %p53 = por %p51, %p52
      %p54 = scmp.ne.s32.totalorder %s43, %s44
      %p55 = scmp.eq.s32.totalorder %s14, 0
      %p56 = por %p54, %p55
      %p57 = scmp.ne.s32.totalorder %s43, %s44
      %p58 = scmp.eq.s32.totalorder %s15, 1
      %p59 = por %p57, %p58
      %p61 = scmp.ne.s32.totalorder %s44, %s60
      %p62 = scmp.eq.s32.totalorder %s15, 0
      %p63 = por %p61, %p62
      %s64 = ssub.s32 %s9, %s16
      %p65 = scmp.eq.s32.totalorder %s64, 0
      %s67 = sadd.s32 %s66, 1
      %s68 = scalar_select %p65, %s66, %s67
      %p71 = pneg %p65
      %p72 = scmp.eq.s32.totalorder %s9, 1
      %p73 = por %p71, %p72
      %p74 = scmp.ne.s32.totalorder %s66, %s69
      %p75 = scmp.eq.s32.totalorder %s9, 0
      %p76 = por %p74, %p75
      %p77 = scmp.ne.s32.totalorder %s66, %s69
      %p78 = scmp.eq.s32.totalorder %s14, 1
      %p79 = por %p77, %p78
      %p80 = scmp.ne.s32.totalorder %s69, %s70
      %p81 = scmp.eq.s32.totalorder %s14, 0
      %p82 = por %p80, %p81
      %p83 = scmp.ne.s32.totalorder %s69, %s70
      %p84 = scmp.eq.s32.totalorder %s15, 1
      %p85 = por %p83, %p84
      %p87 = scmp.ne.s32.totalorder %s70, %s86
      %p88 = scmp.eq.s32.totalorder %s15, 0
      %p89 = por %p87, %p88
      %p90 = scmp.le.s32.totalorder 1, %s9
      %p91 = scmp.lt.s32.totalorder %s9, 3
      %p92 = pnand %p90, %p91
      %p93 = pneg %p92
      // Predicated region
      $region9: #{step_forward.1} parent=5 // pred_check
        _
      $region10: #{step_forward.1} parent=5 // pred_check_branch
        %95 = sbr.rel (%p92) target = $region12
      $region11: #{step_forward.1} parent=5 // pred_region
        %s96 = ssub.s32 %s9, 1
        // Predicated region
        $region13: #{step_forward.1} parent=11 // pred_check
          %p97 = pneg %p30
        $region14: #{step_forward.1} parent=11 // pred_check_branch
          %99 = sbr.rel (%p97) target = $region16
        $region15: #{step_forward.1} parent=11 // pred_region
          %s101 = ssub.s32 16, 16
          %102 = vsyncadd [#allocation3], %s101
          %s104 = sshll.u32 %s0, 4
          %s105 = int_to_ptr.vmem [resolvable:$true] %s104
          %107 = dma.vmem_to_smem %s105, 16, [#allocation2], [#allocation3]
        $region16: #{step_forward.1} parent=11 // pred_fallthru
          _
      $region12: #{step_forward.1} parent=5 // pred_fallthru
        _
      %p108 = scmp.lt.s32.totalorder %s9, 2
      // Predicated region
      $region17: #{step_forward.1} parent=5 // pred_check
        %p109 = pneg %p108
      $region18: #{step_forward.1} parent=5 // pred_check_branch
        %111 = sbr.rel (%p109) target = $region20
      $region19: #{step_forward.1} parent=5 // pred_region
        // Predicated region
        $region21: #{step_forward.1} parent=19 // pred_check
          %p112 = pneg %p50
        $region22: #{step_forward.1} parent=19 // pred_check_branch
          %114 = sbr.rel (%p112) target = $region24
        $region23: #{step_forward.1} parent=19 // pred_region
          %p115 = scmp.lt.s32.totalorder %s9, 1
          %s116 = scalar_select %p115, %s9, 1
          %s117 = smul.addr %s116, 8
          %s118 = scalar_lea.vmem %s1, %s117
        $region24: #{step_forward.1} parent=19 // pred_fallthru
          _
      $region20: #{step_forward.1} parent=5 // pred_fallthru
        _
      %p119 = scmp.le.s32.totalorder 1, %s9
      %p120 = scmp.lt.s32.totalorder %s9, 3
      %p121 = pnand %p119, %p120
      %p122 = pneg %p121
      // Predicated region
      $region25: #{step_forward.1} parent=5 // pred_check
        _
      $region26: #{step_forward.1} parent=5 // pred_check_branch
        %124 = sbr.rel (%p121) target = $region28
      $region27: #{step_forward.1} parent=5 // pred_region
        %s125 = ssub.s32 %s9, 1
        // Predicated region
        $region29: #{step_forward.1} parent=27 // pred_check
          %p126 = pneg %p30
        $region30: #{step_forward.1} parent=27 // pred_check_branch
          %128 = sbr.rel (%p126) target = $region32
        $region31: #{step_forward.1} parent=27 // pred_region
          %129 = dma.done [#allocation3], 16
        $region32: #{step_forward.1} parent=27 // pred_fallthru
          _
        %130 = sfence
        %p131 = pneg %p30
        %p132 = pneg %p27
        %p133 = scmp.lt.s32.totalorder %s14, 1
        %s134 = scalar_select %p133, %s14, 1
        %s135 = smul.addr %s134, 8
        %s136 = scalar_lea.vmem %s1, %s135
        %p137 = pneg %p56
        %p138 = pneg %p53
        %p139 = pneg %p82
        %p140 = pneg %p79
        %p141 = scmp.lt.s32.totalorder %s14, 1
        %s142 = scalar_select %p141, %s14, 1
        %s143 = smul.addr %s142, 8
        %s144 = scalar_lea.vmem %s2, %s143
        %p145 = scmp.lt.s32.totalorder %s14, 1
        %s146 = scalar_select %p145, %s14, 1
        %s147 = smul.addr %s146, 8
        %s148 = scalar_lea.vmem %s1, %s147
        %p149 = scmp.lt.s32.totalorder %s14, 1
        %s150 = scalar_select %p149, %s14, 1
        %s151 = smul.addr %s150, 8
        %s152 = scalar_lea.vmem %s2, %s151
        %v153 = vld [vmem:[%s148] sm:$0xff]
        %s154 = sld [smem:[#allocation2]]
        %s155 = sld [smem:[#allocation2 + $0x1]]
        %s156 = sld [smem:[#allocation2 + $0x2]]
        %s157 = sld [smem:[#allocation2 + $0x3]]
        %s158 = sld [smem:[#allocation2 + $0x4]]
        %s159 = sld [smem:[#allocation2 + $0x5]]
        %s160 = sld [smem:[#allocation2 + $0x6]]
        %s161 = sld [smem:[#allocation2 + $0x7]]
        %s162 = sld [smem:[#allocation2 + $0x8]]
        %s163 = sld [smem:[#allocation2 + $0x9]]
        %s164 = sld [smem:[#allocation2 + $0xa]]
        %s165 = sld [smem:[#allocation2 + $0xb]]
        %s166 = sld [smem:[#allocation2 + $0xc]]
        %s167 = sld [smem:[#allocation2 + $0xd]]
        %s168 = sld [smem:[#allocation2 + $0xe]]
        %s169 = sld [smem:[#allocation2 + $0xf]]
        %s170 = sld [smem:[#allocation2 + $0x10]]
        %v171 = vstv %s154
        %vm172 = vcmp.ge.f32.partialorder %v153, -7.0
        %v173 = vstv %s155
        %v174 = vsel %vm172, %v173, %v171
        %vm175 = vcmp.ge.f32.partialorder %v153, -6.0
        %v176 = vstv %s156
        %v177 = vsel %vm175, %v176, %v174
        %vm178 = vcmp.ge.f32.partialorder %v153, -5.0
        %v179 = vstv %s157
        %v180 = vsel %vm178, %v179, %v177
        %vm181 = vcmp.ge.f32.partialorder %v153, -4.0
        %v182 = vstv %s158
        %v183 = vsel %vm181, %v182, %v180
        %vm184 = vcmp.ge.f32.partialorder %v153, -3.0
        %v185 = vstv %s159
        %v186 = vsel %vm184, %v185, %v183
        %vm187 = vcmp.ge.f32.partialorder %v153, -2.0
        %v188 = vstv %s160
        %v189 = vsel %vm187, %v188, %v186
        %vm190 = vcmp.ge.f32.partialorder %v153, -1.0
        %v191 = vstv %s161
        %v192 = vsel %vm190, %v191, %v189
        %vm193 = vcmp.ge.f32.partialorder %v153, 0.0
        %v194 = vstv %s162
        %v195 = vsel %vm193, %v194, %v192
        %vm196 = vcmp.ge.f32.partialorder %v153, 1.0
        %v197 = vstv %s163
        %v198 = vsel %vm196, %v197, %v195
        %vm199 = vcmp.ge.f32.partialorder %v153, 2.0
        %v200 = vstv %s164
        %v201 = vsel %vm199, %v200, %v198
        %vm202 = vcmp.ge.f32.partialorder %v153, 3.0
        %v203 = vstv %s165
        %v204 = vsel %vm202, %v203, %v201
        %vm205 = vcmp.ge.f32.partialorder %v153, 4.0
        %v206 = vstv %s166
        %v207 = vsel %vm205, %v206, %v204
        %vm208 = vcmp.ge.f32.partialorder %v153, 5.0
        %v209 = vstv %s167
        %v210 = vsel %vm208, %v209, %v207
        %vm211 = vcmp.ge.f32.partialorder %v153, 6.0
        %v212 = vstv %s168
        %v213 = vsel %vm211, %v212, %v210
        %vm214 = vcmp.ge.f32.partialorder %v153, 7.0
        %v215 = vstv %s169
        %v216 = vsel %vm214, %v215, %v213
        %vm217 = vcmp.ge.f32.partialorder %v153, 8.0
        %v218 = vstv %s170
        %v219 = vsel %vm217, %v218, %v216
        %220 = vst [vmem:[%s152] sm:$0xff] %v219
        %p221 = scmp.lt.s32.totalorder %s14, 1
        %s222 = scalar_select %p221, %s14, 1
        %s223 = smul.addr %s222, 8
        %s224 = scalar_lea.vmem %s2, %s223
        // Predicated region
        $region33: #{step_forward.1} parent=27 // pred_check
          %p225 = pneg %p79
        $region34: #{step_forward.1} parent=27 // pred_check_branch
          %227 = sbr.rel (%p225) target = $region36
        $region35: #{step_forward.1} parent=27 // pred_region
          _
        $region36: #{step_forward.1} parent=27 // pred_fallthru
          _
      $region28: #{step_forward.1} parent=5 // pred_fallthru
        _
      %p228 = scmp.le.s32.totalorder 2, %s9
      // Predicated region
      $region37: #{step_forward.1} parent=5 // pred_check
        %p229 = pneg %p228
      $region38: #{step_forward.1} parent=5 // pred_check_branch
        %231 = sbr.rel (%p229) target = $region40
      $region39: #{step_forward.1} parent=5 // pred_region
        %s232 = ssub.s32 %s9, 2
        // Predicated region
        $region41: #{step_forward.1} parent=39 // pred_check
          %p233 = pneg %p85
        $region42: #{step_forward.1} parent=39 // pred_check_branch
          %235 = sbr.rel (%p233) target = $region44
        $region43: #{step_forward.1} parent=39 // pred_region
          %p236 = scmp.lt.s32.totalorder %s15, 1
          %s237 = scalar_select %p236, %s15, 1
          %s238 = smul.addr %s237, 8
          %s239 = scalar_lea.vmem %s2, %s238
        $region44: #{step_forward.1} parent=39 // pred_fallthru
          _
      $region40: #{step_forward.1} parent=5 // pred_fallthru
        _
    $region6: #{step_forward.1} parent=1 // loop_footer
      %s13 = sadd.s32 1, %s9
    $region7: #{step_forward.1} parent=1 // loop_footer_branch
      %8 = sbr.rel target = $region3
    $region8: #{step_forward.1} parent=1 // loop_exit
      _
    %240 = vsyncpa [#allocation3], 1
    %s241 = scalar_lea.sflag [#allocation3], 1
    %242 = vsyncpa %s241, 1

</llo_original>
